<compile_context>
chip_gen: v5e
topology: v5e:2x2
jax: 0.10.0
libtpu: 0.0.40
codegen_flags: <defaults>
</compile_context>

<pallas_src>
import math
from functools import partial

import jax
import jax.numpy as jnp
from jax.experimental import pallas as pl
from jax.experimental.pallas import tpu as pltpu


VMEM_LIMIT_BYTES = 64 * 1024 * 1024   # explicit scoped-VMEM budget (<= v7x physical)


# ----------------------------- in-kernel math helpers ------------------------

def _layer_norm(x, gamma, beta, eps):
    # Matches RnaBertLayerNorm: (x - mean) / sqrt(var + eps) * w + b
    u = jnp.mean(x, axis=-1, keepdims=True)
    s = jnp.mean(jnp.square(x - u), axis=-1, keepdims=True)
    return gamma * ((x - u) * jax.lax.rsqrt(s + eps)) + beta


def _erf(x):
    # Abramowitz & Stegun 7.1.26, |error| < 1.5e-7.  Uses only exp / mul /
    # add / div / select so it lowers cleanly in Mosaic on every generation.
    a1, a2, a3, a4, a5 = 0.254829592, -0.284496736, 1.421413741, -1.453152027, 1.061405429
    p = 0.3275911
    sgn = jnp.where(x >= 0.0, 1.0, -1.0)
    ax = x * sgn
    t = 1.0 / (1.0 + p * ax)
    poly = ((((a5 * t + a4) * t + a3) * t + a2) * t + a1) * t
    return sgn * (1.0 - poly * jnp.exp(-ax * ax))


def _gelu_erf(x):
    # HF ACT2FN["gelu"]: exact (erf-based) GELU.
    return 0.5 * x * (1.0 + _erf(x * 0.7071067811865476))


# ------------------- kernel 1: fused QKV projection + attention ---------------

def _qkv_attn_kernel(x_ref, mask_ref, wqkv_ref, bqkv_ref, ctx_ref, *, nh, hd):
    H = nh * hd
    x = x_ref[0]                                                   # (S, H)
    # single fused (S, 3H) projection; 1/sqrt(hd) is pre-folded into q columns
    qkv = (jnp.dot(x, wqkv_ref[...], preferred_element_type=jnp.float32)
           + bqkv_ref[...])                                        # (S, 3H) f32
    mask = mask_ref[0]                                             # (mh, mq, S) additive f32
    mh = mask.shape[0]

    outs = []
    for n in range(nh):                                            # static unroll over heads
        q = qkv[:, n * hd:(n + 1) * hd]                            # (S, hd)
        k = qkv[:, H + n * hd:H + (n + 1) * hd]                    # (S, hd)
        v = qkv[:, 2 * H + n * hd:2 * H + (n + 1) * hd]            # (S, hd)
        s = jax.lax.dot_general(q, k, (((1,), (1,)), ((), ())),
                                preferred_element_type=jnp.float32)  # (S, S)
        s = s + (mask[n] if mh > 1 else mask[0])
        m = jnp.max(s, axis=-1, keepdims=True)
        p = jnp.exp(s - m)                                         # unnormalized probs
        l = jnp.sum(p, axis=-1, keepdims=True)                     # (S, 1)
        # attention dropout is identity in eval mode
        o = jnp.dot(p, v, preferred_element_type=jnp.float32)      # (S, hd)
        # normalize AFTER the PV matmul: an (S,hd) multiply instead of an
        # (S,S) divide.  (approx=True would move the reciprocal to the EUP in
        # prod; exact kept here so the small-shape correctness check is tight.)
        outs.append(o * pl.reciprocal(l, approx=False))
    # merge heads with one lane-dense store: no transpose, no HBM round-trip
    ctx_ref[0] = jnp.concatenate(outs, axis=-1).astype(ctx_ref.dtype)
    # TODO(synk): q-tiling / flash-style streaming for long sequences (the
    # full (S,S) per-head score tile scales quadratically; matters on v7x).


def _qkv_attention(x, mask, wqkv_t, bqkv, *, nh, hd):
    B, S, H = x.shape
    mb, mh, mq, mk = mask.shape
    seq_blk = pl.BlockSpec((1, S, H), lambda b: (b, 0, 0))
    mask_blk = pl.BlockSpec(
        (1, mh, mq, mk),
        (lambda b: (b, 0, 0, 0)) if mb > 1 else (lambda b: (0, 0, 0, 0)))
    # resident weights: constant index_map -> DMA'd once, stays in VMEM.
    # TODO(synk): on v7x use bf16 weights (+ single-buffered weight specs) to
    # halve resident-weight VMEM under the 64 MiB budget.
    w_blk = pl.BlockSpec((H, 3 * H), lambda b: (0, 0))
    b_blk = pl.BlockSpec((1, 3 * H), lambda b: (0, 0))
    return pl.pallas_call(
        partial(_qkv_attn_kernel, nh=nh, hd=hd),
        grid=(B,),
        in_specs=[seq_blk, mask_blk, w_blk, b_blk],
        out_specs=seq_blk,
        out_shape=jax.ShapeDtypeStruct((B, S, H), x.dtype),
        compiler_params=pltpu.CompilerParams(
            dimension_semantics=("parallel",),
            vmem_limit_bytes=VMEM_LIMIT_BYTES),
    )(x, mask, wqkv_t, bqkv)


# ----------------------- kernel 2: self-output + FFN + output -----------------

def _post_attn_kernel(ctx_ref, res_ref,
                      wo_ref, bo_ref, g1_ref, beta1_ref,
                      wi_ref, bi_ref, w2_ref, b2_ref, g2_ref, beta2_ref,
                      out_ref, *, eps):
    ctx = ctx_ref[...]                               # (tm, H) merged-head context
    res = res_ref[...]                               # (tm, H) residual (layer input)
    a = jnp.dot(ctx, wo_ref[...], preferred_element_type=jnp.float32) + bo_ref[...]
    attn_out = _layer_norm(a + res, g1_ref[...], beta1_ref[...], eps)
    h = jnp.dot(attn_out, wi_ref[...], preferred_element_type=jnp.float32) + bi_ref[...]
    h = _gelu_erf(h)
    y = jnp.dot(h, w2_ref[...], preferred_element_type=jnp.float32) + b2_ref[...]
    out = _layer_norm(y + attn_out, g2_ref[...], beta2_ref[...], eps)
    out_ref[...] = out.astype(out_ref.dtype)


def _post_attn(ctx, res, p, *, tm, eps):
    N, H = ctx.shape
    I = p["w_inter_t"].shape[1]
    row = pl.BlockSpec((tm, H), lambda i: (i, 0))

    def const(shape):
        return pl.BlockSpec(shape, lambda i: (0,) * len(shape))

    return pl.pallas_call(
        partial(_post_attn_kernel, eps=eps),
        grid=(pl.cdiv(N, tm),),
        in_specs=[row, row,
                  const((H, H)), const((1, H)), const((1, H)), const((1, H)),
                  const((H, I)), const((1, I)), const((I, H)), const((1, H)),
                  const((1, H)), const((1, H))],
        out_specs=row,
        out_shape=jax.ShapeDtypeStruct((N, H), ctx.dtype),
        compiler_params=pltpu.CompilerParams(
            dimension_semantics=("parallel",),
            vmem_limit_bytes=VMEM_LIMIT_BYTES),
    )(ctx, res,
      p["w_attn_out_t"], p["b_attn_out"], p["ln1_w"], p["ln1_b"],
      p["w_inter_t"], p["b_inter"], p["w_out_t"], p["b_out"],
      p["ln2_w"], p["ln2_b"])


# ----------------------------- wrapper ----------------------------------------

def prepare_params(raw, num_attention_heads, weight_dtype=jnp.float32):
    """One-time (load-time) layout prep:
      * nn.Linear weights transposed to (in, out),
      * wq/wk/wv fused into a single (H, 3H) weight + (1, 3H) bias,
      * 1/sqrt(head_dim) folded into the q columns / q bias,
      * vectors reshaped to (1, dim).
    Biases / LayerNorm params / eps stay f32 even if weight_dtype=bf16
    (production knob for v6e/v7x HBM + MXU rate).
    # TODO(synk): zero-pad H / I to multiples of 128 for the real RnaBERT dims
    # (H=120, I=40, hd=10) for lane-dense stores; requires a masked LayerNorm.
    """
    H = raw["wq"].shape[0]
    hd = H // num_attention_heads
    scale = 1.0 / math.sqrt(hd)
    r2 = lambda v: v.reshape(1, -1).astype(jnp.float32)
    wqkv_t = jnp.concatenate(
        [raw["wq"].T * scale, raw["wk"].T, raw["wv"].T], axis=1).astype(weight_dtype)
    bqkv = jnp.concatenate(
        [raw["bq"] * scale, raw["bk"], raw["bv"]]).reshape(1, -1).astype(jnp.float32)
    return {
        "wqkv_t": wqkv_t, "bqkv": bqkv,
        "w_attn_out_t": raw["w_attn_out"].T.astype(weight_dtype),
        "b_attn_out": r2(raw["b_attn_out"]),
        "ln1_w": r2(raw["ln1_w"]), "ln1_b": r2(raw["ln1_b"]),
        "w_inter_t": raw["w_inter"].T.astype(weight_dtype),
        "b_inter": r2(raw["b_inter"]),
        "w_out_t": raw["w_out"].T.astype(weight_dtype),
        "b_out": r2(raw["b_out"]),
        "ln2_w": r2(raw["ln2_w"]), "ln2_b": r2(raw["ln2_b"]),
    }


def rnabert_layer(hidden_states, attention_mask, params, *, num_attention_heads,
                  layer_norm_eps=1e-12, row_tile=256):
    """hidden_states: (B, S, H).  attention_mask: additive mask broadcastable
    to (B, num_heads, S, S) — e.g. the HF extended mask (B, 1, 1, S), a causal
    (1, 1, S, S) mask, or a per-head (B, nh, S, S) mask."""
    B, S, H = hidden_states.shape
    nh = num_attention_heads
    hd = H // nh
    N = B * S

    # normalize the mask to 4-D f32 additive (kept f32 even in bf16 prod)
    mask = attention_mask.astype(jnp.float32)
    mask = mask.reshape((1,) * (4 - mask.ndim) + mask.shape)
    mb, mh, mq, mk = mask.shape
    assert mk == S and mq in (1, S) and mh in (1, nh) and mb in (1, B), mask.shape

    # fused QKV projection + attention, gridded over batch: q/k/v and the head
    # split/merge never leave VMEM (no HBM round-trips, no XLA transposes).
    ctx = _qkv_attention(hidden_states, mask, params["wqkv_t"], params["bqkv"],
                         nh=nh, hd=hd)

    # (B,S,H) -> (N,H) is a free contiguous reshape — no extra HBM pass.
    out = _post_attn(ctx.reshape(N, H), hidden_states.reshape(N, H), params,
                     tm=min(N, row_tile), eps=layer_norm_eps)
    # TODO(synk): output_attentions=True (returning attention probs) not wired up.
    return out.reshape(B, S, H)


# ----------------------------- reference + test --------------------------------

def _reference_layer(hs, mask, raw, nh, eps=1e-12):
    B, S, H = hs.shape
    hd = H // nh
    lin = lambda x, w, b: x @ w.T + b

    def ln(x, w, b):
        u = x.mean(-1, keepdims=True)
        s = ((x - u) ** 2).mean(-1, keepdims=True)
        return w * ((x - u) / jnp.sqrt(s + eps)) + b

    def heads(t):
        return t.reshape(B, S, nh, hd).transpose(0, 2, 1, 3)

    q = heads(lin(hs, raw["wq"], raw["bq"]))
    k = heads(lin(hs, raw["wk"], raw["bk"]))
    v = heads(lin(hs, raw["wv"], raw["bv"]))
    scores = jnp.einsum("bhqd,bhkd->bhqk", q, k) / math.sqrt(hd) + mask
    probs = jax.nn.softmax(scores, axis=-1)
    ctx = jnp.einsum("bhqk,bhkd->bhqd", probs, v).transpose(0, 2, 1, 3).reshape(B, S, H)
    attn_out = ln(lin(ctx, raw["w_attn_out"], raw["b_attn_out"]) + hs,
                  raw["ln1_w"], raw["ln1_b"])
    inter = jax.nn.gelu(lin(attn_out, raw["w_inter"], raw["b_inter"]),
                        approximate=False)
    return ln(lin(inter, raw["w_out"], raw["b_out"]) + attn_out,
              raw["ln2_w"], raw["ln2_b"])


if __name__ == "__main__":
    B, S, H, NH, I = 2, 8, 32, 4, 64

    key = jax.random.PRNGKey(0)
    ks = jax.random.split(key, 20)

    def lin_init(kw, kb, fan_out, fan_in):
        w = jax.random.normal(kw, (fan_out, fan_in), jnp.float32) / math.sqrt(fan_in)
        b = jax.random.normal(kb, (fan_out,), jnp.float32) * 0.01
        return w, b

    hidden_states = jax.random.normal(ks[0], (B, S, H), dtype=jnp.float32)

    raw = {}
    raw["wq"], raw["bq"] = lin_init(ks[1], ks[2], H, H)
    raw["wk"], raw["bk"] = lin_init(ks[3], ks[4], H, H)
    raw["wv"], raw["bv"] = lin_init(ks[5], ks[6], H, H)
    raw["w_attn_out"], raw["b_attn_out"] = lin_init(ks[7], ks[8], H, H)
    raw["ln1_w"] = 1.0 + 0.1 * jax.random.normal(ks[9], (H,), jnp.float32)
    raw["ln1_b"] = 0.01 * jax.random.normal(ks[10], (H,), jnp.float32)
    raw["w_inter"], raw["b_inter"] = lin_init(ks[11], ks[12], I, H)
    raw["w_out"], raw["b_out"] = lin_init(ks[13], ks[14], H, I)
    raw["ln2_w"] = 1.0 + 0.1 * jax.random.normal(ks[15], (H,), jnp.float32)
    raw["ln2_b"] = 0.01 * jax.random.normal(ks[16], (H,), jnp.float32)

    # HF-style extended additive mask: second sequence padded to length 5.
    lengths = jnp.array([S, 5], dtype=jnp.int32)
    valid = (jnp.arange(S)[None, :] < lengths[:, None]).astype(jnp.float32)   # (B, S)
    attention_mask = (1.0 - valid)[:, None, None, :] * -10000.0               # (B,1,1,S)

    params = prepare_params(raw, NH)   # one-time layout prep (fused/pre-scaled QKV)

    out = rnabert_layer(hidden_states, attention_mask, params,
                        num_attention_heads=NH)
    jax.block_until_ready(out)

    ref = _reference_layer(hidden_states, attention_mask, raw, NH)
    assert out.shape == (B, S, H)
    assert jnp.allclose(out, ref, atol=1e-4, rtol=1e-4), (
        float(jnp.max(jnp.abs(out - ref))))

    print("KERNEL_OK")
</pallas_src>

<mosaic_0001>
module attributes {stable_mosaic.version = 11 : i64} {
  func.func @_qkv_attn_kernel(%arg0: i32, %arg1: memref<1x8x32xf32, #tpu.memory_space<vmem>>, %arg2: memref<1x1x1x8xf32, #tpu.memory_space<vmem>>, %arg3: memref<32x96xf32, #tpu.memory_space<vmem>>, %arg4: memref<1x96xf32, #tpu.memory_space<vmem>>, %arg5: memref<1x8x32xf32, #tpu.memory_space<vmem>>) attributes {dimension_semantics = [#tpu.dimension_semantics<parallel>], iteration_bounds = array<i64: 2>, scalar_prefetch = 0 : i64, scratch_operands = 0 : i64, tpu.core_type = #tpu.core_type<tc>, window_params = [{transform_indices = @transform_0, window_bounds = array<i64: 1, 8, 32>}, {transform_indices = @transform_1, window_bounds = array<i64: 1, 1, 1, 8>}, {pipeline_mode = #tpu.pipeline_mode<synchronous>, transform_indices = @transform_2, window_bounds = array<i64: 32, 96>}, {pipeline_mode = #tpu.pipeline_mode<synchronous>, transform_indices = @transform_3, window_bounds = array<i64: 1, 96>}, {transform_indices = @transform_4, window_bounds = array<i64: 1, 8, 32>}]} {
    %c0 = arith.constant 0 : index
    %c0_0 = arith.constant 0 : index
    %c0_1 = arith.constant 0 : index
    %0 = vector.load %arg1[%c0, %c0_0, %c0_1] : memref<1x8x32xf32, #tpu.memory_space<vmem>>, vector<1x8x32xf32>
    %1 = vector.shape_cast %0 : vector<1x8x32xf32> to vector<8x32xf32>
    %c0_2 = arith.constant 0 : index
    %c0_3 = arith.constant 0 : index
    %2 = vector.load %arg3[%c0_2, %c0_3] : memref<32x96xf32, #tpu.memory_space<vmem>>, vector<32x96xf32>
    %cst = arith.constant dense<0.000000e+00> : vector<8x96xf32>
    %3 = tpu.matmul %1, %2, %cst {dimension_numbers = #tpu.dot_dimension_numbers<[1], [0], [0], [1], [0, 0, 1, 1], [], []>} : vector<8x32xf32>, vector<32x96xf32>, vector<8x96xf32> -> vector<8x96xf32>
    %c0_4 = arith.constant 0 : index
    %c0_5 = arith.constant 0 : index
    %4 = vector.load %arg4[%c0_4, %c0_5] : memref<1x96xf32, #tpu.memory_space<vmem>>, vector<1x96xf32>
    %5 = vector.broadcast %4 : vector<1x96xf32> to vector<8x96xf32>
    %6 = arith.addf %3, %5 : vector<8x96xf32>
    %c0_6 = arith.constant 0 : index
    %c0_7 = arith.constant 0 : index
    %c0_8 = arith.constant 0 : index
    %c0_9 = arith.constant 0 : index
    %7 = vector.load %arg2[%c0_6, %c0_7, %c0_8, %c0_9] : memref<1x1x1x8xf32, #tpu.memory_space<vmem>>, vector<1x1x1x8xf32>
    %8 = vector.shape_cast %7 : vector<1x1x1x8xf32> to vector<1x1x8xf32>
    %9 = vector.extract_strided_slice %6 {offsets = [0, 0], sizes = [8, 8], strides = [1, 1]} : vector<8x96xf32> to vector<8x8xf32>
    %10 = vector.extract_strided_slice %6 {offsets = [0, 32], sizes = [8, 8], strides = [1, 1]} : vector<8x96xf32> to vector<8x8xf32>
    %11 = vector.extract_strided_slice %6 {offsets = [0, 64], sizes = [8, 8], strides = [1, 1]} : vector<8x96xf32> to vector<8x8xf32>
    %cst_10 = arith.constant dense<0.000000e+00> : vector<8x8xf32>
    %12 = tpu.matmul %9, %10, %cst_10 {dimension_numbers = #tpu.dot_dimension_numbers<[1], [1], [0], [0], [0, 0, 1, 0], [], []>} : vector<8x8xf32>, vector<8x8xf32>, vector<8x8xf32> -> vector<8x8xf32>
    %13 = vector.shape_cast %8 : vector<1x1x8xf32> to vector<1x8xf32>
    %14 = vector.broadcast %13 : vector<1x8xf32> to vector<8x8xf32>
    %15 = arith.addf %12, %14 : vector<8x8xf32>
    %cst_11 = arith.constant dense<0xFF800000> : vector<8xf32>
    %16 = vector.multi_reduction <maximumf>, %15, %cst_11 [1] : vector<8x8xf32> to vector<8xf32>
    %17 = vector.shape_cast %16 : vector<8xf32> to vector<8x1xf32>
    %18 = vector.broadcast %17 : vector<8x1xf32> to vector<8x8xf32>
    %19 = arith.subf %15, %18 : vector<8x8xf32>
    %20 = math.exp %19 : vector<8x8xf32>
    %cst_12 = arith.constant dense<0.000000e+00> : vector<8xf32>
    %21 = vector.multi_reduction <add>, %20, %cst_12 [1] : vector<8x8xf32> to vector<8xf32>
    %22 = vector.shape_cast %21 : vector<8xf32> to vector<8x1xf32>
    %cst_13 = arith.constant dense<0.000000e+00> : vector<8x8xf32>
    %23 = tpu.matmul %20, %11, %cst_13 {dimension_numbers = #tpu.dot_dimension_numbers<[1], [0], [0], [1], [0, 0, 1, 1], [], []>} : vector<8x8xf32>, vector<8x8xf32>, vector<8x8xf32> -> vector<8x8xf32>
    %24 = tpu.reciprocal %22 : vector<8x1xf32> -> vector<8x1xf32>
    %25 = vector.broadcast %24 : vector<8x1xf32> to vector<8x8xf32>
    %26 = arith.mulf %23, %25 : vector<8x8xf32>
    %27 = vector.extract_strided_slice %6 {offsets = [0, 8], sizes = [8, 8], strides = [1, 1]} : vector<8x96xf32> to vector<8x8xf32>
    %28 = vector.extract_strided_slice %6 {offsets = [0, 40], sizes = [8, 8], strides = [1, 1]} : vector<8x96xf32> to vector<8x8xf32>
    %29 = vector.extract_strided_slice %6 {offsets = [0, 72], sizes = [8, 8], strides = [1, 1]} : vector<8x96xf32> to vector<8x8xf32>
    %cst_14 = arith.constant dense<0.000000e+00> : vector<8x8xf32>
    %30 = tpu.matmul %27, %28, %cst_14 {dimension_numbers = #tpu.dot_dimension_numbers<[1], [1], [0], [0], [0, 0, 1, 0], [], []>} : vector<8x8xf32>, vector<8x8xf32>, vector<8x8xf32> -> vector<8x8xf32>
    %31 = vector.shape_cast %8 : vector<1x1x8xf32> to vector<1x8xf32>
    %32 = vector.broadcast %31 : vector<1x8xf32> to vector<8x8xf32>
    %33 = arith.addf %30, %32 : vector<8x8xf32>
    %cst_15 = arith.constant dense<0xFF800000> : vector<8xf32>
    %34 = vector.multi_reduction <maximumf>, %33, %cst_15 [1] : vector<8x8xf32> to vector<8xf32>
    %35 = vector.shape_cast %34 : vector<8xf32> to vector<8x1xf32>
    %36 = vector.broadcast %35 : vector<8x1xf32> to vector<8x8xf32>
    %37 = arith.subf %33, %36 : vector<8x8xf32>
    %38 = math.exp %37 : vector<8x8xf32>
    %cst_16 = arith.constant dense<0.000000e+00> : vector<8xf32>
    %39 = vector.multi_reduction <add>, %38, %cst_16 [1] : vector<8x8xf32> to vector<8xf32>
    %40 = vector.shape_cast %39 : vector<8xf32> to vector<8x1xf32>
    %cst_17 = arith.constant dense<0.000000e+00> : vector<8x8xf32>
    %41 = tpu.matmul %38, %29, %cst_17 {dimension_numbers = #tpu.dot_dimension_numbers<[1], [0], [0], [1], [0, 0, 1, 1], [], []>} : vector<8x8xf32>, vector<8x8xf32>, vector<8x8xf32> -> vector<8x8xf32>
    %42 = tpu.reciprocal %40 : vector<8x1xf32> -> vector<8x1xf32>
    %43 = vector.broadcast %42 : vector<8x1xf32> to vector<8x8xf32>
    %44 = arith.mulf %41, %43 : vector<8x8xf32>
    %45 = vector.extract_strided_slice %6 {offsets = [0, 16], sizes = [8, 8], strides = [1, 1]} : vector<8x96xf32> to vector<8x8xf32>
    %46 = vector.extract_strided_slice %6 {offsets = [0, 48], sizes = [8, 8], strides = [1, 1]} : vector<8x96xf32> to vector<8x8xf32>
    %47 = vector.extract_strided_slice %6 {offsets = [0, 80], sizes = [8, 8], strides = [1, 1]} : vector<8x96xf32> to vector<8x8xf32>
    %cst_18 = arith.constant dense<0.000000e+00> : vector<8x8xf32>
    %48 = tpu.matmul %45, %46, %cst_18 {dimension_numbers = #tpu.dot_dimension_numbers<[1], [1], [0], [0], [0, 0, 1, 0], [], []>} : vector<8x8xf32>, vector<8x8xf32>, vector<8x8xf32> -> vector<8x8xf32>
    %49 = vector.shape_cast %8 : vector<1x1x8xf32> to vector<1x8xf32>
    %50 = vector.broadcast %49 : vector<1x8xf32> to vector<8x8xf32>
    %51 = arith.addf %48, %50 : vector<8x8xf32>
    %cst_19 = arith.constant dense<0xFF800000> : vector<8xf32>
    %52 = vector.multi_reduction <maximumf>, %51, %cst_19 [1] : vector<8x8xf32> to vector<8xf32>
    %53 = vector.shape_cast %52 : vector<8xf32> to vector<8x1xf32>
    %54 = vector.broadcast %53 : vector<8x1xf32> to vector<8x8xf32>
    %55 = arith.subf %51, %54 : vector<8x8xf32>
    %56 = math.exp %55 : vector<8x8xf32>
    %cst_20 = arith.constant dense<0.000000e+00> : vector<8xf32>
    %57 = vector.multi_reduction <add>, %56, %cst_20 [1] : vector<8x8xf32> to vector<8xf32>
    %58 = vector.shape_cast %57 : vector<8xf32> to vector<8x1xf32>
    %cst_21 = arith.constant dense<0.000000e+00> : vector<8x8xf32>
    %59 = tpu.matmul %56, %47, %cst_21 {dimension_numbers = #tpu.dot_dimension_numbers<[1], [0], [0], [1], [0, 0, 1, 1], [], []>} : vector<8x8xf32>, vector<8x8xf32>, vector<8x8xf32> -> vector<8x8xf32>
    %60 = tpu.reciprocal %58 : vector<8x1xf32> -> vector<8x1xf32>
    %61 = vector.broadcast %60 : vector<8x1xf32> to vector<8x8xf32>
    %62 = arith.mulf %59, %61 : vector<8x8xf32>
    %63 = vector.extract_strided_slice %6 {offsets = [0, 24], sizes = [8, 8], strides = [1, 1]} : vector<8x96xf32> to vector<8x8xf32>
    %64 = vector.extract_strided_slice %6 {offsets = [0, 56], sizes = [8, 8], strides = [1, 1]} : vector<8x96xf32> to vector<8x8xf32>
    %65 = vector.extract_strided_slice %6 {offsets = [0, 88], sizes = [8, 8], strides = [1, 1]} : vector<8x96xf32> to vector<8x8xf32>
    %cst_22 = arith.constant dense<0.000000e+00> : vector<8x8xf32>
    %66 = tpu.matmul %63, %64, %cst_22 {dimension_numbers = #tpu.dot_dimension_numbers<[1], [1], [0], [0], [0, 0, 1, 0], [], []>} : vector<8x8xf32>, vector<8x8xf32>, vector<8x8xf32> -> vector<8x8xf32>
    %67 = vector.shape_cast %8 : vector<1x1x8xf32> to vector<1x8xf32>
    %68 = vector.broadcast %67 : vector<1x8xf32> to vector<8x8xf32>
    %69 = arith.addf %66, %68 : vector<8x8xf32>
    %cst_23 = arith.constant dense<0xFF800000> : vector<8xf32>
    %70 = vector.multi_reduction <maximumf>, %69, %cst_23 [1] : vector<8x8xf32> to vector<8xf32>
    %71 = vector.shape_cast %70 : vector<8xf32> to vector<8x1xf32>
    %72 = vector.broadcast %71 : vector<8x1xf32> to vector<8x8xf32>
    %73 = arith.subf %69, %72 : vector<8x8xf32>
    %74 = math.exp %73 : vector<8x8xf32>
    %cst_24 = arith.constant dense<0.000000e+00> : vector<8xf32>
    %75 = vector.multi_reduction <add>, %74, %cst_24 [1] : vector<8x8xf32> to vector<8xf32>
    %76 = vector.shape_cast %75 : vector<8xf32> to vector<8x1xf32>
    %cst_25 = arith.constant dense<0.000000e+00> : vector<8x8xf32>
    %77 = tpu.matmul %74, %65, %cst_25 {dimension_numbers = #tpu.dot_dimension_numbers<[1], [0], [0], [1], [0, 0, 1, 1], [], []>} : vector<8x8xf32>, vector<8x8xf32>, vector<8x8xf32> -> vector<8x8xf32>
    %78 = tpu.reciprocal %76 : vector<8x1xf32> -> vector<8x1xf32>
    %79 = vector.broadcast %78 : vector<8x1xf32> to vector<8x8xf32>
    %80 = arith.mulf %77, %79 : vector<8x8xf32>
    %81 = tpu.concatenate %26, %44, %62, %80 in 1 : vector<8x8xf32>, vector<8x8xf32>, vector<8x8xf32>, vector<8x8xf32> -> vector<8x32xf32>
    %c0_26 = arith.constant 0 : index
    %c0_27 = arith.constant 0 : index
    %c0_28 = arith.constant 0 : index
    %82 = vector.load %arg5[%c0_26, %c0_27, %c0_28] : memref<1x8x32xf32, #tpu.memory_space<vmem>>, vector<1x8x32xf32>
    %83 = vector.shape_cast %82 : vector<1x8x32xf32> to vector<8x32xf32>
    %84 = vector.shape_cast %81 : vector<8x32xf32> to vector<1x8x32xf32>
    tpu.vector_store %arg5[%c0_26, %c0_27, %c0_28], %84 {strides = array<i32>} : memref<1x8x32xf32, #tpu.memory_space<vmem>>, vector<1x8x32xf32>,
    return
  }
  func.func @transform_0(%arg0: i32) -> (i32, i32, i32) {
    %c0_i32 = arith.constant 0 : i32
    %c0_i32_0 = arith.constant 0 : i32
    %c0_i32_1 = arith.constant 0 : i32
    return %arg0, %c0_i32, %c0_i32_0 : i32, i32, i32
  }
  func.func @transform_1(%arg0: i32) -> (i32, i32, i32, i32) {
    %c0_i32 = arith.constant 0 : i32
    %c0_i32_0 = arith.constant 0 : i32
    %c0_i32_1 = arith.constant 0 : i32
    %c0_i32_2 = arith.constant 0 : i32
    return %arg0, %c0_i32, %c0_i32_0, %c0_i32_1 : i32, i32, i32, i32
  }
  func.func @transform_2(%arg0: i32) -> (i32, i32) {
    %c0_i32 = arith.constant 0 : i32
    %c0_i32_0 = arith.constant 0 : i32
    %c0_i32_1 = arith.constant 0 : i32
    return %c0_i32, %c0_i32_0 : i32, i32
  }
  func.func @transform_3(%arg0: i32) -> (i32, i32) {
    %c0_i32 = arith.constant 0 : i32
    %c0_i32_0 = arith.constant 0 : i32
    %c0_i32_1 = arith.constant 0 : i32
    return %c0_i32, %c0_i32_0 : i32, i32
  }
  func.func @transform_4(%arg0: i32) -> (i32, i32, i32) {
    %c0_i32 = arith.constant 0 : i32
    %c0_i32_0 = arith.constant 0 : i32
    %c0_i32_1 = arith.constant 0 : i32
    return %arg0, %c0_i32, %c0_i32_0 : i32, i32, i32
  }
}

</mosaic_0001>

<llo_original>
// kernel: tpu_custom_call.1
$region0: #{tpu_custom_call.1}
  #allocation0 [shape = 'u32[]', space=smem, size = 0x4, offset = 0x4, fixed_abs, tag = 'smem constant byte address 0x4 - core index']
  #allocation1 [shape = 'u32[72,128]{1,0:T(1,128)}', space=vmem, size = 0x9000, scoped, tag = 'internal scratch']
  %s0 = inlined_call_operand.hbm [shape: f32[2,8,32], index: 0, kind: input, shape index: {}]
  %s1 = inlined_call_operand.hbm [shape: f32[2,1,1,8], index: 1, kind: input, shape index: {}]
  %s2 = inlined_call_operand.hbm [shape: f32[32,96], index: 2, kind: input, shape index: {}]
  %s3 = inlined_call_operand.vmem [shape: f32[1,96], index: 3, kind: input, shape index: {}]
  %s4 = inlined_call_operand.hbm [shape: f32[2,8,32], index: 4, kind: output, shape index: {}]
  %s5 = sld [smem:[#allocation0]]
  $region61: #{tpu_custom_call.1} parent=0
    _
  %s7 = ssub.s32 1, %s5
  %s8 = scalar_select 0, %s7, %s5
  $region1: #{tpu_custom_call.1} parent=0
    #allocation2 [shape = 'u8[8192]{0}', space=vmem, size = 0x2000, scoped, tag = 'input window, operand 0']
    #allocation3 [shape = 's32[2]{0}', space=sflag, size = 0x8, scoped, tag = 'scoped memory for tpu_custom_call.1']
    #allocation4 [shape = 's32[2]{0}', space=sflag, size = 0x8, scoped, tag = 'scoped memory for tpu_custom_call.1']
    #allocation5 [shape = 'u8[1024]{0}', space=vmem, size = 0x400, scoped, tag = 'input window, operand 1']
    #allocation6 [shape = 's32[2]{0}', space=sflag, size = 0x8, scoped, tag = 'scoped memory for tpu_custom_call.1']
    #allocation7 [shape = 'u8[16384]{0}', space=vmem, size = 0x4000, scoped, tag = 'input window, operand 2, single buffered']
    #allocation8 [shape = 'u8[8192]{0}', space=vmem, size = 0x2000, scoped, tag = 'output window, operand 0']
    %9 = vsyncpa [#allocation3], 0
    %s10 = scalar_lea.sflag [#allocation3], 1
    %11 = vsyncpa %s10, 0
    %12 = vsyncpa [#allocation6], 0
    %s13 = scalar_lea.sflag [#allocation6], 1
    %14 = vsyncpa %s13, 0
    %15 = vsyncpa [#allocation4], 0
    %s16 = scalar_lea.sflag [#allocation4], 1
    %17 = vsyncpa %s16, 0
    loop: start=0, step=1, limit=4
    $region2: #{tpu_custom_call.1} parent=1 // loop_pre_header
      _
    $region3: #{tpu_custom_call.1} parent=1 // loop_header
      %s19 = sphi 0, %s23
      %p20 = scmp.ge.s32.totalorder %s19, 4
      %s29 = sphi 0, %s31
      %s32 = sphi 0, %s29
      %s33 = sphi 0, %s32
      %s49 = sphi 0, %s33
      %s55 = sphi 0, %s57
      %s58 = sphi 0, %s55
      %s59 = sphi 0, %s58
      %s75 = sphi 0, %s59
      %s79 = sphi 0, %s79
      %s81 = sphi 0, %s79
      %s82 = sphi 0, %s81
      %s96 = sphi 0, %s82
      %s100 = sphi 0, %s100
      %s102 = sphi 0, %s100
      %s103 = sphi 0, %s102
      %s117 = sphi 0, %s103
      %s123 = sphi 0, %s125
      %s126 = sphi 0, %s123
      %s127 = sphi 0, %s126
      %s143 = sphi 0, %s127
    $region4: #{tpu_custom_call.1} parent=1 // loop_header_branch
      %22 = sbr.rel (%p20) target = $region8
    $region5: #{tpu_custom_call.1} parent=1 // loop_body
      %s24 = ssub.s32 %s19, 1
      %s25 = ssub.s32 %s19, 2
      %s26 = sadd.s32 %s19, 1
      %s27 = ssub.s32 %s19, %s26
      %p28 = scmp.eq.s32.totalorder %s27, 0
      %s30 = sadd.s32 %s29, 1
      %s31 = scalar_select %p28, %s29, %s30
      %p34 = pneg %p28
      %p35 = scmp.eq.s32.totalorder %s19, 1
      %p36 = por %p34, %p35
      %p37 = scmp.ne.s32.totalorder %s29, %s32
      %p38 = scmp.eq.s32.totalorder %s19, 0
      %p39 = por %p37, %p38
      %p40 = scmp.ne.s32.totalorder %s29, %s32
      %p41 = scmp.eq.s32.totalorder %s24, 1
      %p42 = por %p40, %p41
      %p43 = scmp.ne.s32.totalorder %s32, %s33
      %p44 = scmp.eq.s32.totalorder %s24, 0
      %p45 = por %p43, %p44
      %p46 = scmp.ne.s32.totalorder %s32, %s33
      %p47 = scmp.eq.s32.totalorder %s25, 1
      %p48 = por %p46, %p47
      %p50 = scmp.ne.s32.totalorder %s33, %s49
      %p51 = scmp.eq.s32.totalorder %s25, 0
      %p52 = por %p50, %p51
      %s53 = ssub.s32 %s19, %s26
      %p54 = scmp.eq.s32.totalorder %s53, 0
      %s56 = sadd.s32 %s55, 1
      %s57 = scalar_select %p54, %s55, %s56
      %p60 = pneg %p54
      %p61 = scmp.eq.s32.totalorder %s19, 1
      %p62 = por %p60, %p61
      %p63 = scmp.ne.s32.totalorder %s55, %s58
      %p64 = scmp.eq.s32.totalorder %s19, 0
      %p65 = por %p63, %p64
      %p66 = scmp.ne.s32.totalorder %s55, %s58
      %p67 = scmp.eq.s32.totalorder %s24, 1
      %p68 = por %p66, %p67
      %p69 = scmp.ne.s32.totalorder %s58, %s59
      %p70 = scmp.eq.s32.totalorder %s24, 0
      %p71 = por %p69, %p70
      %p72 = scmp.ne.s32.totalorder %s58, %s59
      %p73 = scmp.eq.s32.totalorder %s25, 1
      %p74 = por %p72, %p73
      %p76 = scmp.ne.s32.totalorder %s59, %s75
      %p77 = scmp.eq.s32.totalorder %s25, 0
      %p78 = por %p76, %p77
      %s80 = sadd.s32 %s79, 1
      %p83 = scmp.eq.s32.totalorder %s19, 1
      %p84 = scmp.ne.s32.totalorder %s79, %s81
      %p85 = scmp.eq.s32.totalorder %s19, 0
      %p86 = por %p84, %p85
      %p87 = scmp.ne.s32.totalorder %s79, %s81
      %p88 = scmp.eq.s32.totalorder %s24, 1
      %p89 = por %p87, %p88
      %p90 = scmp.ne.s32.totalorder %s81, %s82
      %p91 = scmp.eq.s32.totalorder %s24, 0
      %p92 = por %p90, %p91
      %p93 = scmp.ne.s32.totalorder %s81, %s82
      %p94 = scmp.eq.s32.totalorder %s25, 1
      %p95 = por %p93, %p94
      %p97 = scmp.ne.s32.totalorder %s82, %s96
      %p98 = scmp.eq.s32.totalorder %s25, 0
      %p99 = por %p97, %p98
      %s101 = sadd.s32 %s100, 1
      %p104 = scmp.eq.s32.totalorder %s19, 1
      %p105 = scmp.ne.s32.totalorder %s100, %s102
      %p106 = scmp.eq.s32.totalorder %s19, 0
      %p107 = por %p105, %p106
      %p108 = scmp.ne.s32.totalorder %s100, %s102
      %p109 = scmp.eq.s32.totalorder %s24, 1
      %p110 = por %p108, %p109
      %p111 = scmp.ne.s32.totalorder %s102, %s103
      %p112 = scmp.eq.s32.totalorder %s24, 0
      %p113 = por %p111, %p112
      %p114 = scmp.ne.s32.totalorder %s102, %s103
      %p115 = scmp.eq.s32.totalorder %s25, 1
      %p116 = por %p114, %p115
      %p118 = scmp.ne.s32.totalorder %s103, %s117
      %p119 = scmp.eq.s32.totalorder %s25, 0
      %p120 = por %p118, %p119
      %s121 = ssub.s32 %s19, %s26
      %p122 = scmp.eq.s32.totalorder %s121, 0
      %s124 = sadd.s32 %s123, 1
      %s125 = scalar_select %p122, %s123, %s124
      %p128 = pneg %p122
      %p129 = scmp.eq.s32.totalorder %s19, 1
      %p130 = por %p128, %p129
      %p131 = scmp.ne.s32.totalorder %s123, %s126
      %p132 = scmp.eq.s32.totalorder %s19, 0
      %p133 = por %p131, %p132
      %p134 = scmp.ne.s32.totalorder %s123, %s126
      %p135 = scmp.eq.s32.totalorder %s24, 1
      %p136 = por %p134, %p135
      %p137 = scmp.ne.s32.totalorder %s126, %s127
      %p138 = scmp.eq.s32.totalorder %s24, 0
      %p139 = por %p137, %p138
      %p140 = scmp.ne.s32.totalorder %s126, %s127
      %p141 = scmp.eq.s32.totalorder %s25, 1
      %p142 = por %p140, %p141
      %p144 = scmp.ne.s32.totalorder %s127, %s143
      %p145 = scmp.eq.s32.totalorder %s25, 0
      %p146 = por %p144, %p145
      %p147 = scmp.le.s32.totalorder 1, %s19
      %p148 = scmp.lt.s32.totalorder %s19, 3
      %p149 = pnand %p147, %p148
      %p150 = pneg %p149
      // Predicated region
      $region9: #{tpu_custom_call.1} parent=5 // pred_check
        _
      $region10: #{tpu_custom_call.1} parent=5 // pred_check_branch
        %152 = sbr.rel (%p149) target = $region12
      $region11: #{tpu_custom_call.1} parent=5 // pred_region
        %s153 = ssub.s32 %s19, 1
        // Predicated region
        $region13: #{tpu_custom_call.1} parent=11 // pred_check
          %p154 = pneg %p92
        $region14: #{tpu_custom_call.1} parent=11 // pred_check_branch
          %156 = sbr.rel (%p154) target = $region16
        $region15: #{tpu_custom_call.1} parent=11 // pred_region
          %158 = vsyncadd [#allocation6], 0
          %s159 = sshll.u32 %s2, 4
          %s160 = int_to_ptr.hbm [resolvable:$true] %s159
          %s161 = sshll.u32 [#allocation7], 4
          %s162 = int_to_ptr.vmem [resolvable:$true] %s161
          %167 = dma.hbm_to_vmem [thread:$0]  %s160, 512, %s162, [#allocation6], 128, 128, 8
        $region16: #{tpu_custom_call.1} parent=11 // pred_fallthru
          _
        // Predicated region
        $region17: #{tpu_custom_call.1} parent=11 // pred_check
          %p168 = pneg %p113
        $region18: #{tpu_custom_call.1} parent=11 // pred_check_branch
          %170 = sbr.rel (%p168) target = $region20
        $region19: #{tpu_custom_call.1} parent=11 // pred_region
          _
        $region20: #{tpu_custom_call.1} parent=11 // pred_fallthru
          _
      $region12: #{tpu_custom_call.1} parent=5 // pred_fallthru
        _
      %p171 = scmp.lt.s32.totalorder %s19, 2
      // Predicated region
      $region21: #{tpu_custom_call.1} parent=5 // pred_check
        %p172 = pneg %p171
      $region22: #{tpu_custom_call.1} parent=5 // pred_check_branch
        %174 = sbr.rel (%p172) target = $region24
      $region23: #{tpu_custom_call.1} parent=5 // pred_region
        // Predicated region
        $region25: #{tpu_custom_call.1} parent=23 // pred_check
          %p175 = pneg %p39
        $region26: #{tpu_custom_call.1} parent=23 // pred_check_branch
          %177 = sbr.rel (%p175) target = $region28
        $region27: #{tpu_custom_call.1} parent=23 // pred_region
          %s178 = sand.u32 %s29, 1
          %s179 = scalar_lea.sflag [#allocation3], %s178
          %s180 = sand.u32 %s29, 1
          %s181 = smul.addr %s180, 8
          %s182 = scalar_lea.vmem [#allocation2], %s181
          %184 = vsyncadd %s179, 0
          %s185 = smul.addr %s19, 8
          %s186 = scalar_lea.hbm %s0, %s185
          %s188 = sshll.u32 %s186, 4
          %s189 = int_to_ptr.hbm [resolvable:$true] %s188
          %s190 = sshll.u32 %s182, 4
          %s191 = int_to_ptr.vmem [resolvable:$true] %s190
          %193 = dma.hbm_to_vmem [thread:$0]  %s189, 128, %s191, %s179
        $region28: #{tpu_custom_call.1} parent=23 // pred_fallthru
          _
        // Predicated region
        $region29: #{tpu_custom_call.1} parent=23 // pred_check
          %p194 = pneg %p65
        $region30: #{tpu_custom_call.1} parent=23 // pred_check_branch
          %196 = sbr.rel (%p194) target = $region32
        $region31: #{tpu_custom_call.1} parent=23 // pred_region
          %s197 = sand.u32 %s19, 1
          %s198 = scalar_lea.sflag [#allocation6], %s197
          %s199 = sand.u32 %s55, 1
          %s200 = scalar_lea.vmem [#allocation5], %s199
          %202 = vsyncadd %s198, 0
          %s203 = scalar_lea.hbm %s1, %s19
          %s205 = sshll.u32 %s203, 4
          %s206 = int_to_ptr.hbm [resolvable:$true] %s205
          %s207 = sshll.u32 %s200, 4
          %s208 = int_to_ptr.vmem [resolvable:$true] %s207
          %210 = dma.hbm_to_vmem [thread:$0]  %s206, 16, %s208, %s198
        $region32: #{tpu_custom_call.1} parent=23 // pred_fallthru
          _
      $region24: #{tpu_custom_call.1} parent=5 // pred_fallthru
        _
      %p211 = scmp.le.s32.totalorder 1, %s19
      %p212 = scmp.lt.s32.totalorder %s19, 3
      %p213 = pnand %p211, %p212
      %p214 = pneg %p213
      // Predicated region
      $region33: #{tpu_custom_call.1} parent=5 // pred_check
        _
      $region34: #{tpu_custom_call.1} parent=5 // pred_check_branch
        %216 = sbr.rel (%p213) target = $region36
      $region35: #{tpu_custom_call.1} parent=5 // pred_region
        %s217 = ssub.s32 %s19, 1
        %s218 = sand.u32 %s32, 1
        %s219 = scalar_lea.sflag [#allocation3], %s218
        %s220 = sand.u32 %s32, 1
        %s221 = smul.addr %s220, 8
        %s222 = scalar_lea.vmem [#allocation2], %s221
        // Predicated region
        $region37: #{tpu_custom_call.1} parent=35 // pred_check
          %p223 = pneg %p45
        $region38: #{tpu_custom_call.1} parent=35 // pred_check_branch
          %225 = sbr.rel (%p223) target = $region40
        $region39: #{tpu_custom_call.1} parent=35 // pred_region
          %227 = dma.done %s219, 128
        $region40: #{tpu_custom_call.1} parent=35 // pred_fallthru
          _
        %s228 = sand.u32 %s24, 1
        %s229 = scalar_lea.sflag [#allocation6], %s228
        %s230 = sand.u32 %s58, 1
        %s231 = scalar_lea.vmem [#allocation5], %s230
        // Predicated region
        $region41: #{tpu_custom_call.1} parent=35 // pred_check
          %p232 = pneg %p71
        $region42: #{tpu_custom_call.1} parent=35 // pred_check_branch
          %234 = sbr.rel (%p232) target = $region44
        $region43: #{tpu_custom_call.1} parent=35 // pred_region
          %236 = dma.done %s229, 16
        $region44: #{tpu_custom_call.1} parent=35 // pred_fallthru
          _
        // Predicated region
        $region45: #{tpu_custom_call.1} parent=35 // pred_check
          %p237 = pneg %p92
        $region46: #{tpu_custom_call.1} parent=35 // pred_check_branch
          %239 = sbr.rel (%p237) target = $region48
        $region47: #{tpu_custom_call.1} parent=35 // pred_region
          %241 = dma.done [#allocation6], 512
        $region48: #{tpu_custom_call.1} parent=35 // pred_fallthru
          _
        %s242 = sand.u32 %s32, 1
        %s243 = scalar_lea.sflag [#allocation3], %s242
        %s244 = sand.u32 %s32, 1
        %s245 = smul.addr %s244, 8
        %s246 = scalar_lea.vmem [#allocation2], %s245
        %p247 = pneg %p45
        %p248 = pneg %p42
        %s249 = sand.u32 %s24, 1
        %s250 = scalar_lea.sflag [#allocation6], %s249
        %s251 = sand.u32 %s58, 1
        %s252 = scalar_lea.vmem [#allocation5], %s251
        %p253 = pneg %p71
        %p254 = pneg %p68
        %p255 = pneg %p92
        %p256 = pneg %p89
        %p257 = pneg %p113
        %p258 = pneg %p110
        %p259 = pneg %p139
        %p260 = pneg %p136
        %s261 = sand.u32 %s126, 1
        %s262 = scalar_lea.sflag [#allocation4], %s261
        %s263 = sand.u32 %s126, 1
        %s264 = smul.addr %s263, 8
        %s265 = scalar_lea.vmem [#allocation8], %s264
        %v266 = vld [vmem:[%s222] sm:$0xff]
        %v267 = vld [vmem:[#allocation7] sm:$0xff]
        %v268 = vld [vmem:[#allocation7 + $0x8] sm:$0xff]
        %v269 = vld [vmem:[#allocation7 + $0x10] sm:$0xff]
        %v270 = vld [vmem:[#allocation7 + $0x18] sm:$0xff]
        %v271 = vld [vmem:[%s3] sm:$0x1]
        %v273 = vperm.slane %v271, 0
        %vm275 = vcmask 261120
        %v277 = vsel %vm275, %v266, 0
        %279 = vmatpush.msra.mxu0 0.0
        %280 = vmatpush.msra.mxu0 0.0
        %281 = vmatpush.msra.mxu0 0.0
        %282 = vmatpush.msra.mxu0 0.0
        %283 = vmatpush.msra.mxu0 0.0
        %284 = vmatpush.msra.mxu0 0.0
        %285 = vmatpush.msra.mxu0 0.0
        %286 = vmatpush.msra.mxu0 0.0
        %287 = vmatpush.msra.mxu0 0.0
        %288 = vmatpush.msra.mxu0 0.0
        %289 = vmatpush.msra.mxu0 0.0
        %290 = vmatpush.msra.mxu0 0.0
        %291 = vmatpush.msra.mxu0 %v270
        %292 = vmatpush.msra.mxu0 %v269
        %293 = vmatpush.msra.mxu0 %v268
        %294 = vmatpush.msra.mxu0 %v267
        %295 = vmatmul.f32.gmra.mxu0 %v277
        %v296 = vpop.f32.mrf.mxu0
        %v297 = vadd.f32 %v273, %v296
        %298 = vdwg.mxu0
        %v299 = vld [vmem:[%s231] sm:$0x1]
        %v301 = vperm.slane %v299, 0
        %304 = vrot.lane.b32.xlu0 %v297, 96
        %v305 = vpop.permute.xlu0 %304
        %vm306 = vcmask 64512
        %v307 = vsel %vm306, %v297, 0
        %v309 = vsel %vm306, %v305, 0
        %311 = vmatpush.xpose.msra.mxu0 0.0
        %312 = vmatpush.xpose.msra.mxu0 0.0
        %313 = vmatpush.xpose.msra.mxu0 0.0
        %314 = vmatpush.xpose.msra.mxu0 0.0
        %315 = vmatpush.xpose.msra.mxu0 0.0
        %316 = vmatpush.xpose.msra.mxu0 0.0
        %317 = vmatpush.xpose.msra.mxu0 0.0
        %318 = vmatpush.xpose.msra.mxu0 0.0
        %319 = vmatpush.xpose.msra.mxu0 0.0
        %320 = vmatpush.xpose.msra.mxu0 0.0
        %321 = vmatpush.xpose.msra.mxu0 0.0
        %322 = vmatpush.xpose.msra.mxu0 0.0
        %323 = vmatpush.xpose.msra.mxu0 0.0
        %324 = vmatpush.xpose.msra.mxu0 0.0
        %325 = vmatpush.xpose.msra.mxu0 0.0
        %326 = vmatpush.xpose.msra.mxu0 %v309
        %327 = vmatmul.f32.gmra.mxu0 %v307
        %v328 = vpop.f32.mrf.mxu0
        %v329 = vadd.f32 %v301, %v328
        %330 = vdwg.mxu0
        %v331 = vsel %vm306, %v329, -inf
        %332 = vmax.xlane.f32.xlu0 %v331
        %v333 = vpop.xlane.xlu0 %332
        %v334 = vsub.f32 %v329, %v333
        %v335 = vmul.f32 %v334, 1.442695
        %v336 = vpow.pop %v335
        %v337 = vsel %vm306, %v336, 0.0
        %338 = vadd.xlane.f32.xlu0 %v337
        %v339 = vpop.xlane.xlu0 %338
        %340 = vrot.lane.b32.xlu0 %v297, 64
        %v341 = vpop.permute.xlu0 %340
        %v344 = vsel %vm306, %v336, 0
        %346 = vmatpush.msra.mxu0 0.0
        %347 = vmatpush.msra.mxu0 0.0
        %348 = vmatpush.msra.mxu0 0.0
        %349 = vmatpush.msra.mxu0 0.0
        %350 = vmatpush.msra.mxu0 0.0
        %351 = vmatpush.msra.mxu0 0.0
        %352 = vmatpush.msra.mxu0 0.0
        %353 = vmatpush.msra.mxu0 0.0
        %354 = vmatpush.msra.mxu0 0.0
        %355 = vmatpush.msra.mxu0 0.0
        %356 = vmatpush.msra.mxu0 0.0
        %357 = vmatpush.msra.mxu0 0.0
        %358 = vmatpush.msra.mxu0 0.0
        %359 = vmatpush.msra.mxu0 0.0
        %360 = vmatpush.msra.mxu0 0.0
        %361 = vmatpush.msra.mxu0 %v341
        %362 = vmatmul.f32.gmra.mxu0 %v344
        %v363 = vpop.f32.mrf.mxu0
        %v364 = vadd.f32 0.0, %v363
        %365 = vdwg.mxu0
        %v366 = vrcp.pop %v339
        %v367 = vmul.f32 %v339, %v366
        %v368 = vsub.f32 1.0, %v367
        %v369 = vmul.f32 %v366, %v368
        %v370 = vadd.f32 %v366, %v369
        %vm371 = vweird.f32 %v339
        %vm372 = vweird.f32 %v366
        %vm373 = vmor %vm371, %vm372
        %v374 = vsel %vm373, %v366, %v370
        %v375 = vand.u32 2147483647, %v339
        %vm376 = vcmp.eq.f32.partialorder %v375, 8.507059e+37
        %v377 = vand.u32 %v339, 2147483648
        %v378 = vor.u32 1.1754944e-38, %v377
        %v379 = vsel %vm376, %v378, %v374
        %v380 = vmul.f32 %v364, %v379
        %381 = vrot.lane.b32.xlu0 %v297, 120
        %v382 = vpop.permute.xlu0 %381
        %383 = vrot.lane.b32.xlu0 %v297, 88
        %v384 = vpop.permute.xlu0 %383
        %v385 = vsel %vm306, %v382, 0
        %v387 = vsel %vm306, %v384, 0
        %389 = vmatpush.xpose.msra.mxu0 0.0
        %390 = vmatpush.xpose.msra.mxu0 0.0
        %391 = vmatpush.xpose.msra.mxu0 0.0
        %392 = vmatpush.xpose.msra.mxu0 0.0
        %393 = vmatpush.xpose.msra.mxu0 0.0
        %394 = vmatpush.xpose.msra.mxu0 0.0
        %395 = vmatpush.xpose.msra.mxu0 0.0
        %396 = vmatpush.xpose.msra.mxu0 0.0
        %397 = vmatpush.xpose.msra.mxu0 0.0
        %398 = vmatpush.xpose.msra.mxu0 0.0
        %399 = vmatpush.xpose.msra.mxu0 0.0
        %400 = vmatpush.xpose.msra.mxu0 0.0
        %401 = vmatpush.xpose.msra.mxu0 0.0
        %402 = vmatpush.xpose.msra.mxu0 0.0
        %403 = vmatpush.xpose.msra.mxu0 0.0
        %404 = vmatpush.xpose.msra.mxu0 %v387
        %405 = vmatmul.f32.gmra.mxu0 %v385
        %v406 = vpop.f32.mrf.mxu0
        %v407 = vadd.f32 %v301, %v406
        %408 = vdwg.mxu0
        %v409 = vsel %vm306, %v407, -inf
        %410 = vmax.xlane.f32.xlu0 %v409
        %v411 = vpop.xlane.xlu0 %410
        %v412 = vsub.f32 %v407, %v411
        %v413 = vmul.f32 %v412, 1.442695
        %v414 = vpow.pop %v413
        %v415 = vsel %vm306, %v414, 0.0
        %416 = vadd.xlane.f32.xlu0 %v415
        %v417 = vpop.xlane.xlu0 %416
        %418 = vrot.lane.b32.xlu0 %v297, 56
        %v419 = vpop.permute.xlu0 %418
        %v422 = vsel %vm306, %v414, 0
        %424 = vmatpush.msra.mxu0 0.0
        %425 = vmatpush.msra.mxu0 0.0
        %426 = vmatpush.msra.mxu0 0.0
        %427 = vmatpush.msra.mxu0 0.0
        %428 = vmatpush.msra.mxu0 0.0
        %429 = vmatpush.msra.mxu0 0.0
        %430 = vmatpush.msra.mxu0 0.0
        %431 = vmatpush.msra.mxu0 0.0
        %432 = vmatpush.msra.mxu0 0.0
        %433 = vmatpush.msra.mxu0 0.0
        %434 = vmatpush.msra.mxu0 0.0
        %435 = vmatpush.msra.mxu0 0.0
        %436 = vmatpush.msra.mxu0 0.0
        %437 = vmatpush.msra.mxu0 0.0
        %438 = vmatpush.msra.mxu0 0.0
        %439 = vmatpush.msra.mxu0 %v419
        %440 = vmatmul.f32.gmra.mxu0 %v422
        %v441 = vpop.f32.mrf.mxu0
        %v442 = vadd.f32 0.0, %v441
        %443 = vdwg.mxu0
        %v444 = vrcp.pop %v417
        %v445 = vmul.f32 %v417, %v444
        %v446 = vsub.f32 1.0, %v445
        %v447 = vmul.f32 %v444, %v446
        %v448 = vadd.f32 %v444, %v447
        %vm449 = vweird.f32 %v417
        %vm450 = vweird.f32 %v444
        %vm451 = vmor %vm449, %vm450
        %v452 = vsel %vm451, %v444, %v448
        %v453 = vand.u32 2147483647, %v417
        %vm454 = vcmp.eq.f32.partialorder %v453, 8.507059e+37
        %v455 = vand.u32 %v417, 2147483648
        %v456 = vor.u32 1.1754944e-38, %v455
        %v457 = vsel %vm454, %v456, %v452
        %v458 = vmul.f32 %v442, %v457
        %459 = vrot.lane.b32.xlu0 %v297, 112
        %v460 = vpop.permute.xlu0 %459
        %461 = vrot.lane.b32.xlu0 %v297, 80
        %v462 = vpop.permute.xlu0 %461
        %v463 = vsel %vm306, %v460, 0
        %v465 = vsel %vm306, %v462, 0
        %467 = vmatpush.xpose.msra.mxu0 0.0
        %468 = vmatpush.xpose.msra.mxu0 0.0
        %469 = vmatpush.xpose.msra.mxu0 0.0
        %470 = vmatpush.xpose.msra.mxu0 0.0
        %471 = vmatpush.xpose.msra.mxu0 0.0
        %472 = vmatpush.xpose.msra.mxu0 0.0
        %473 = vmatpush.xpose.msra.mxu0 0.0
        %474 = vmatpush.xpose.msra.mxu0 0.0
        %475 = vmatpush.xpose.msra.mxu0 0.0
        %476 = vmatpush.xpose.msra.mxu0 0.0
        %477 = vmatpush.xpose.msra.mxu0 0.0
        %478 = vmatpush.xpose.msra.mxu0 0.0
        %479 = vmatpush.xpose.msra.mxu0 0.0
        %480 = vmatpush.xpose.msra.mxu0 0.0
        %481 = vmatpush.xpose.msra.mxu0 0.0
        %482 = vmatpush.xpose.msra.mxu0 %v465
        %483 = vmatmul.f32.gmra.mxu0 %v463
        %v484 = vpop.f32.mrf.mxu0
        %v485 = vadd.f32 %v301, %v484
        %486 = vdwg.mxu0
        %v487 = vsel %vm306, %v485, -inf
        %488 = vmax.xlane.f32.xlu0 %v487
        %v489 = vpop.xlane.xlu0 %488
        %v490 = vsub.f32 %v485, %v489
        %v491 = vmul.f32 %v490, 1.442695
        %v492 = vpow.pop %v491
        %v493 = vsel %vm306, %v492, 0.0
        %494 = vadd.xlane.f32.xlu0 %v493
        %v495 = vpop.xlane.xlu0 %494
        %496 = vrot.lane.b32.xlu0 %v297, 48
        %v497 = vpop.permute.xlu0 %496
        %v500 = vsel %vm306, %v492, 0
        %502 = vmatpush.msra.mxu0 0.0
        %503 = vmatpush.msra.mxu0 0.0
        %504 = vmatpush.msra.mxu0 0.0
        %505 = vmatpush.msra.mxu0 0.0
        %506 = vmatpush.msra.mxu0 0.0
        %507 = vmatpush.msra.mxu0 0.0
        %508 = vmatpush.msra.mxu0 0.0
        %509 = vmatpush.msra.mxu0 0.0
        %510 = vmatpush.msra.mxu0 0.0
        %511 = vmatpush.msra.mxu0 0.0
        %512 = vmatpush.msra.mxu0 0.0
        %513 = vmatpush.msra.mxu0 0.0
        %514 = vmatpush.msra.mxu0 0.0
        %515 = vmatpush.msra.mxu0 0.0
        %516 = vmatpush.msra.mxu0 0.0
        %517 = vmatpush.msra.mxu0 %v497
        %518 = vmatmul.f32.gmra.mxu0 %v500
        %v519 = vpop.f32.mrf.mxu0
        %v520 = vadd.f32 0.0, %v519
        %521 = vdwg.mxu0
        %v522 = vrcp.pop %v495
        %v523 = vmul.f32 %v495, %v522
        %v524 = vsub.f32 1.0, %v523
        %v525 = vmul.f32 %v522, %v524
        %v526 = vadd.f32 %v522, %v525
        %vm527 = vweird.f32 %v495
        %vm528 = vweird.f32 %v522
        %vm529 = vmor %vm527, %vm528
        %v530 = vsel %vm529, %v522, %v526
        %v531 = vand.u32 2147483647, %v495
        %vm532 = vcmp.eq.f32.partialorder %v531, 8.507059e+37
        %v533 = vand.u32 %v495, 2147483648
        %v534 = vor.u32 1.1754944e-38, %v533
        %v535 = vsel %vm532, %v534, %v530
        %v536 = vmul.f32 %v520, %v535
        %537 = vrot.lane.b32.xlu0 %v297, 104
        %v538 = vpop.permute.xlu0 %537
        %539 = vrot.lane.b32.xlu0 %v297, 72
        %v540 = vpop.permute.xlu0 %539
        %v541 = vsel %vm306, %v538, 0
        %v543 = vsel %vm306, %v540, 0
        %545 = vmatpush.xpose.msra.mxu0 0.0
        %546 = vmatpush.xpose.msra.mxu0 0.0
        %547 = vmatpush.xpose.msra.mxu0 0.0
        %548 = vmatpush.xpose.msra.mxu0 0.0
        %549 = vmatpush.xpose.msra.mxu0 0.0
        %550 = vmatpush.xpose.msra.mxu0 0.0
        %551 = vmatpush.xpose.msra.mxu0 0.0
        %552 = vmatpush.xpose.msra.mxu0 0.0
        %553 = vmatpush.xpose.msra.mxu0 0.0
        %554 = vmatpush.xpose.msra.mxu0 0.0
        %555 = vmatpush.xpose.msra.mxu0 0.0
        %556 = vmatpush.xpose.msra.mxu0 0.0
        %557 = vmatpush.xpose.msra.mxu0 0.0
        %558 = vmatpush.xpose.msra.mxu0 0.0
        %559 = vmatpush.xpose.msra.mxu0 0.0
        %560 = vmatpush.xpose.msra.mxu0 %v543
        %561 = vmatmul.f32.gmra.mxu0 %v541
        %v562 = vpop.f32.mrf.mxu0
        %v563 = vadd.f32 %v301, %v562
        %564 = vdwg.mxu0
        %v565 = vsel %vm306, %v563, -inf
        %566 = vmax.xlane.f32.xlu0 %v565
        %v567 = vpop.xlane.xlu0 %566
        %v568 = vsub.f32 %v563, %v567
        %v569 = vmul.f32 %v568, 1.442695
        %v570 = vpow.pop %v569
        %v571 = vsel %vm306, %v570, 0.0
        %572 = vadd.xlane.f32.xlu0 %v571
        %v573 = vpop.xlane.xlu0 %572
        %574 = vrot.lane.b32.xlu0 %v297, 40
        %v575 = vpop.permute.xlu0 %574
        %v578 = vsel %vm306, %v570, 0
        %580 = vmatpush.msra.mxu0 0.0
        %581 = vmatpush.msra.mxu0 0.0
        %582 = vmatpush.msra.mxu0 0.0
        %583 = vmatpush.msra.mxu0 0.0
        %584 = vmatpush.msra.mxu0 0.0
        %585 = vmatpush.msra.mxu0 0.0
        %586 = vmatpush.msra.mxu0 0.0
        %587 = vmatpush.msra.mxu0 0.0
        %588 = vmatpush.msra.mxu0 0.0
        %589 = vmatpush.msra.mxu0 0.0
        %590 = vmatpush.msra.mxu0 0.0
        %591 = vmatpush.msra.mxu0 0.0
        %592 = vmatpush.msra.mxu0 0.0
        %593 = vmatpush.msra.mxu0 0.0
        %594 = vmatpush.msra.mxu0 0.0
        %595 = vmatpush.msra.mxu0 %v575
        %596 = vmatmul.f32.gmra.mxu0 %v578
        %v597 = vpop.f32.mrf.mxu0
        %v598 = vadd.f32 0.0, %v597
        %599 = vdwg.mxu0
        %v600 = vrcp.pop %v573
        %v601 = vmul.f32 %v573, %v600
        %v602 = vsub.f32 1.0, %v601
        %v603 = vmul.f32 %v600, %v602
        %v604 = vadd.f32 %v600, %v603
        %vm605 = vweird.f32 %v573
        %vm606 = vweird.f32 %v600
        %vm607 = vmor %vm605, %vm606
        %v608 = vsel %vm607, %v600, %v604
        %v609 = vand.u32 2147483647, %v573
        %vm610 = vcmp.eq.f32.partialorder %v609, 8.507059e+37
        %v611 = vand.u32 %v573, 2147483648
        %v612 = vor.u32 1.1754944e-38, %v611
        %v613 = vsel %vm610, %v612, %v608
        %v614 = vmul.f32 %v598, %v613
        %616 = vrot.lane.b32.xlu0 %v458, 8
        %v617 = vpop.permute.xlu0 %616
        %620 = vrot.lane.b32.xlu0 %v536, 16
        %v621 = vpop.permute.xlu0 %620
        %624 = vrot.lane.b32.xlu0 %v614, 24
        %v625 = vpop.permute.xlu0 %624
        %v627 = vsel %vm306, %v380, %v617
        %vm628 = vcmask 130048
        %v629 = vsel %vm628, %v627, %v621
        %vm630 = vcmask 195584
        %v631 = vsel %vm630, %v629, %v625
        %632 = vst.msk [vmem:[%s265] sm:$0xff] %vm275, %v631
        %s633 = sand.u32 %s126, 1
        %s634 = scalar_lea.sflag [#allocation4], %s633
        %s635 = sand.u32 %s126, 1
        %s636 = smul.addr %s635, 8
        %s637 = scalar_lea.vmem [#allocation8], %s636
        // Predicated region
        $region49: #{tpu_custom_call.1} parent=35 // pred_check
          %p638 = pneg %p136
        $region50: #{tpu_custom_call.1} parent=35 // pred_check_branch
          %640 = sbr.rel (%p638) target = $region52
        $region51: #{tpu_custom_call.1} parent=35 // pred_region
          %642 = vsyncadd %s634, 0
          %s643 = smul.addr %s24, 8
          %s644 = scalar_lea.hbm %s4, %s643
          %s646 = sshll.u32 %s637, 4
          %s647 = int_to_ptr.vmem [resolvable:$true] %s646
          %s648 = sshll.u32 %s644, 4
          %s649 = int_to_ptr.hbm [resolvable:$true] %s648
          %651 = dma.vmem_to_hbm [thread:$0]  %s647, 128, %s649, %s634
        $region52: #{tpu_custom_call.1} parent=35 // pred_fallthru
          _
      $region36: #{tpu_custom_call.1} parent=5 // pred_fallthru
        _
      %p652 = scmp.le.s32.totalorder 2, %s19
      // Predicated region
      $region53: #{tpu_custom_call.1} parent=5 // pred_check
        %p653 = pneg %p652
      $region54: #{tpu_custom_call.1} parent=5 // pred_check_branch
        %655 = sbr.rel (%p653) target = $region56
      $region55: #{tpu_custom_call.1} parent=5 // pred_region
        %s656 = ssub.s32 %s19, 2
        // Predicated region
        $region57: #{tpu_custom_call.1} parent=55 // pred_check
          %p657 = pneg %p142
        $region58: #{tpu_custom_call.1} parent=55 // pred_check_branch
          %659 = sbr.rel (%p657) target = $region60
        $region59: #{tpu_custom_call.1} parent=55 // pred_region
          %s660 = sand.u32 %s127, 1
          %s661 = scalar_lea.sflag [#allocation4], %s660
          %s662 = sand.u32 %s127, 1
          %s663 = smul.addr %s662, 8
          %s664 = scalar_lea.vmem [#allocation8], %s663
          %666 = dma.done %s661, 128
        $region60: #{tpu_custom_call.1} parent=55 // pred_fallthru
          _
      $region56: #{tpu_custom_call.1} parent=5 // pred_fallthru
        _
    $region6: #{tpu_custom_call.1} parent=1 // loop_footer
      %s23 = sadd.s32 1, %s19
    $region7: #{tpu_custom_call.1} parent=1 // loop_footer_branch
      %18 = sbr.rel target = $region3
    $region8: #{tpu_custom_call.1} parent=1 // loop_exit
      _
    %667 = vsyncpa [#allocation3], 1
    %s668 = scalar_lea.sflag [#allocation3], 1
    %669 = vsyncpa %s668, 1
    %670 = vsyncpa [#allocation6], 1
    %s671 = scalar_lea.sflag [#allocation6], 1
    %672 = vsyncpa %s671, 1
    %673 = vsyncpa [#allocation4], 1
    %s674 = scalar_lea.sflag [#allocation4], 1
    %675 = vsyncpa %s674, 1

</llo_original>
